<compile_context>
chip_gen: v5e
topology: v5e:2x2
jax: 0.10.0
libtpu: 0.0.40
codegen_flags: <defaults>
</compile_context>

<pallas_src>
import functools

import jax
import jax.numpy as jnp
from jax import lax
from jax.experimental import pallas as pl
from jax.experimental.pallas import tpu as pltpu


def rbm_fwd_kernel(v_ref, u_ref, w_ref, hb_ref, vb_ref, out_ref):
    v = v_ref[...]          # (TILE_B, n_visible) bf16
    w = w_ref[...]          # (n_hidden, n_visible) bf16, stored layout

    # Hidden pre-activation: v @ W.T without materializing W.T — contract the
    # last (n_visible) axis of both operands on the MXU.
    wx_h = lax.dot_general(
        v, w,
        dimension_numbers=(((1,), (1,)), ((), ())),
        preferred_element_type=jnp.float32,
    ) + hb_ref[...]                                   # (TILE_B, n_hidden) f32
    prob_h = jax.nn.sigmoid(wx_h)

    # Bernoulli sample via a single compare against pre-generated U[0,1)
    # uniforms; prob_h == 1.0 always samples 1 since u < 1.0.  Cast straight
    # to bf16 ({0,1} is exact) as the LHS of the next matmul.
    h_sample = (u_ref[...] < prob_h).astype(jnp.bfloat16)  # (TILE_B, n_hidden)

    # Visible reconstruction: sigmoid(h_sample @ W + v_bias)
    wx_v = jnp.dot(h_sample, w, preferred_element_type=jnp.float32) + vb_ref[...]
    out_ref[...] = jax.nn.sigmoid(wx_v)               # (TILE_B, n_visible) f32


def rbm_forward(v, W, h_bias, v_bias, key, tile_b=None):
    """sigmoid(bernoulli(sigmoid(v @ W.T + h_bias)) @ W + v_bias)."""
    B, n_visible = v.shape
    n_hidden = W.shape[0]

    if tile_b is None:
        # Large batches: 256-row tiles (fills 2x256 MXU rows on v6e/v7x).
        # Small batches: a single tile padded up to an 8-sublane multiple.
        tile_b = 256 if B >= 256 else int(-(-B // 8) * 8)
    n_tiles = pl.cdiv(B, tile_b)
    b_pad = n_tiles * tile_b

    v_bf16 = v.astype(jnp.bfloat16)
    if b_pad != B:
        v_bf16 = jnp.pad(v_bf16, ((0, b_pad - B), (0, 0)))

    # Host-side uniforms for the Bernoulli draw (one per padded batch row per
    # hidden unit); tiled identically to the hidden activations.
    u = jax.random.uniform(key, (b_pad, n_hidden), dtype=jnp.float32)

    w_bf16 = W.astype(jnp.bfloat16)
    hb_row = h_bias.reshape(1, n_hidden).astype(jnp.float32)
    vb_row = v_bias.reshape(1, n_visible).astype(jnp.float32)

    out = pl.pallas_call(
        rbm_fwd_kernel,
        out_shape=jax.ShapeDtypeStruct((b_pad, n_visible), jnp.float32),
        grid=(n_tiles,),
        in_specs=[
            pl.BlockSpec((tile_b, n_visible), lambda i: (i, 0)),    # v tile
            pl.BlockSpec((tile_b, n_hidden), lambda i: (i, 0)),     # uniforms
            pl.BlockSpec((n_hidden, n_visible), lambda i: (0, 0)),  # W (resident)
            pl.BlockSpec((1, n_hidden), lambda i: (0, 0)),          # h_bias row
            pl.BlockSpec((1, n_visible), lambda i: (0, 0)),         # v_bias row
        ],
        out_specs=pl.BlockSpec((tile_b, n_visible), lambda i: (i, 0)),
        compiler_params=pltpu.CompilerParams(
            dimension_semantics=("parallel",)),
    )(v_bf16, u, w_bf16, hb_row, vb_row)

    return out[:B] if b_pad != B else out


if __name__ == "__main__":
    # Small shapes consistent with the module: batch=8, n_visible=256, n_hidden=128
    B, n_visible, n_hidden = 8, 256, 128

    key = jax.random.PRNGKey(0)
    k_w, k_v, k_bern = jax.random.split(key, 3)

    # Deterministic parameter init matching RBM.__init__ shapes:
    #   W ~ N(0,1)*0.1 of shape (n_hidden, n_visible); biases are zeros.
    W = jax.random.normal(k_w, (n_hidden, n_visible), dtype=jnp.float32) * 0.1
    h_bias = jnp.zeros((n_hidden,), dtype=jnp.float32)
    v_bias = jnp.zeros((n_visible,), dtype=jnp.float32)

    # Visible input (continuous probabilities in [0,1], typical RBM input).
    v = jax.random.uniform(k_v, (B, n_visible), dtype=jnp.float32)

    out = rbm_forward(v, W, h_bias, v_bias, key=k_bern)
    out = jax.block_until_ready(out)

    assert out.shape == (B, n_visible)
    assert out.dtype == jnp.float32
    assert bool(jnp.all((out >= 0.0) & (out <= 1.0)))
    print("KERNEL_OK")
</pallas_src>

<mosaic_0001>
module attributes {stable_mosaic.version = 11 : i64} {
  func.func @rbm_fwd_kernel(%arg0: i32, %arg1: memref<8x256xbf16, #tpu.memory_space<vmem>>, %arg2: memref<8x128xf32, #tpu.memory_space<vmem>>, %arg3: memref<128x256xbf16, #tpu.memory_space<vmem>>, %arg4: memref<1x128xf32, #tpu.memory_space<vmem>>, %arg5: memref<1x256xf32, #tpu.memory_space<vmem>>, %arg6: memref<8x256xf32, #tpu.memory_space<vmem>>) attributes {dimension_semantics = [#tpu.dimension_semantics<parallel>], iteration_bounds = array<i64: 1>, scalar_prefetch = 0 : i64, scratch_operands = 0 : i64, tpu.core_type = #tpu.core_type<tc>, window_params = [{transform_indices = @transform_0, window_bounds = array<i64: 8, 256>}, {transform_indices = @transform_1, window_bounds = array<i64: 8, 128>}, {pipeline_mode = #tpu.pipeline_mode<synchronous>, transform_indices = @transform_2, window_bounds = array<i64: 128, 256>}, {pipeline_mode = #tpu.pipeline_mode<synchronous>, transform_indices = @transform_3, window_bounds = array<i64: 1, 128>}, {pipeline_mode = #tpu.pipeline_mode<synchronous>, transform_indices = @transform_4, window_bounds = array<i64: 1, 256>}, {transform_indices = @transform_5, window_bounds = array<i64: 8, 256>}]} {
    %c0 = arith.constant 0 : index
    %c0_0 = arith.constant 0 : index
    %0 = vector.load %arg1[%c0, %c0_0] : memref<8x256xbf16, #tpu.memory_space<vmem>>, vector<8x256xbf16>
    %c0_1 = arith.constant 0 : index
    %c0_2 = arith.constant 0 : index
    %1 = vector.load %arg3[%c0_1, %c0_2] : memref<128x256xbf16, #tpu.memory_space<vmem>>, vector<128x256xbf16>
    %cst = arith.constant dense<0.000000e+00> : vector<8x128xf32>
    %2 = tpu.matmul %0, %1, %cst {dimension_numbers = #tpu.dot_dimension_numbers<[1], [1], [0], [0], [0, 0, 1, 0], [], []>} : vector<8x256xbf16>, vector<128x256xbf16>, vector<8x128xf32> -> vector<8x128xf32>
    %c0_3 = arith.constant 0 : index
    %c0_4 = arith.constant 0 : index
    %3 = vector.load %arg4[%c0_3, %c0_4] : memref<1x128xf32, #tpu.memory_space<vmem>>, vector<1x128xf32>
    %4 = vector.broadcast %3 : vector<1x128xf32> to vector<8x128xf32>
    %5 = arith.addf %2, %4 : vector<8x128xf32>
    %6 = arith.negf %5 : vector<8x128xf32>
    %7 = math.exp %6 : vector<8x128xf32>
    %cst_5 = arith.constant 1.000000e+00 : f32
    %8 = vector.broadcast %cst_5 : f32 to vector<8x128xf32>
    %9 = arith.addf %8, %7 : vector<8x128xf32>
    %10 = arith.divf %8, %9 : vector<8x128xf32>
    %c0_6 = arith.constant 0 : index
    %c0_7 = arith.constant 0 : index
    %11 = vector.load %arg2[%c0_6, %c0_7] : memref<8x128xf32, #tpu.memory_space<vmem>>, vector<8x128xf32>
    %12 = arith.cmpf olt, %11, %10 : vector<8x128xf32>
    %13 = arith.extui %12 : vector<8x128xi1> to vector<8x128xi32>
    %14 = arith.sitofp %13 : vector<8x128xi32> to vector<8x128xf32>
    %15 = arith.truncf %14 : vector<8x128xf32> to vector<8x128xbf16>
    %cst_8 = arith.constant dense<0.000000e+00> : vector<8x256xf32>
    %16 = tpu.matmul %15, %1, %cst_8 {dimension_numbers = #tpu.dot_dimension_numbers<[1], [0], [0], [1], [0, 0, 1, 1], [], []>} : vector<8x128xbf16>, vector<128x256xbf16>, vector<8x256xf32> -> vector<8x256xf32>
    %c0_9 = arith.constant 0 : index
    %c0_10 = arith.constant 0 : index
    %17 = vector.load %arg5[%c0_9, %c0_10] : memref<1x256xf32, #tpu.memory_space<vmem>>, vector<1x256xf32>
    %18 = vector.broadcast %17 : vector<1x256xf32> to vector<8x256xf32>
    %19 = arith.addf %16, %18 : vector<8x256xf32>
    %20 = arith.negf %19 : vector<8x256xf32>
    %21 = math.exp %20 : vector<8x256xf32>
    %cst_11 = arith.constant 1.000000e+00 : f32
    %22 = vector.broadcast %cst_11 : f32 to vector<8x256xf32>
    %23 = arith.addf %22, %21 : vector<8x256xf32>
    %24 = arith.divf %22, %23 : vector<8x256xf32>
    %c0_12 = arith.constant 0 : index
    %c0_13 = arith.constant 0 : index
    %25 = vector.load %arg6[%c0_12, %c0_13] : memref<8x256xf32, #tpu.memory_space<vmem>>, vector<8x256xf32>
    tpu.vector_store %arg6[%c0_12, %c0_13], %24 {strides = array<i32>} : memref<8x256xf32, #tpu.memory_space<vmem>>, vector<8x256xf32>,
    return
  }
  func.func @transform_0(%arg0: i32) -> (i32, i32) {
    %c0_i32 = arith.constant 0 : i32
    %c0_i32_0 = arith.constant 0 : i32
    return %arg0, %c0_i32 : i32, i32
  }
  func.func @transform_1(%arg0: i32) -> (i32, i32) {
    %c0_i32 = arith.constant 0 : i32
    %c0_i32_0 = arith.constant 0 : i32
    return %arg0, %c0_i32 : i32, i32
  }
  func.func @transform_2(%arg0: i32) -> (i32, i32) {
    %c0_i32 = arith.constant 0 : i32
    %c0_i32_0 = arith.constant 0 : i32
    %c0_i32_1 = arith.constant 0 : i32
    return %c0_i32, %c0_i32_0 : i32, i32
  }
  func.func @transform_3(%arg0: i32) -> (i32, i32) {
    %c0_i32 = arith.constant 0 : i32
    %c0_i32_0 = arith.constant 0 : i32
    %c0_i32_1 = arith.constant 0 : i32
    return %c0_i32, %c0_i32_0 : i32, i32
  }
  func.func @transform_4(%arg0: i32) -> (i32, i32) {
    %c0_i32 = arith.constant 0 : i32
    %c0_i32_0 = arith.constant 0 : i32
    %c0_i32_1 = arith.constant 0 : i32
    return %c0_i32, %c0_i32_0 : i32, i32
  }
  func.func @transform_5(%arg0: i32) -> (i32, i32) {
    %c0_i32 = arith.constant 0 : i32
    %c0_i32_0 = arith.constant 0 : i32
    return %arg0, %c0_i32 : i32, i32
  }
}

</mosaic_0001>

<llo_original>
// kernel: tpu_custom_call.1
$region0: #{tpu_custom_call.1}
  #allocation0 [shape = 'u32[]', space=smem, size = 0x4, offset = 0x4, fixed_abs, tag = 'smem constant byte address 0x4 - core index']
  #allocation1 [shape = 'u32[72,128]{1,0:T(1,128)}', space=vmem, size = 0x9000, scoped, tag = 'internal scratch']
  %s0 = inlined_call_operand.hbm [shape: bf16[8,256], index: 0, kind: input, shape index: {}]
  %s1 = inlined_call_operand.hbm [shape: f32[8,128], index: 1, kind: input, shape index: {}]
  %s2 = inlined_call_operand.hbm [shape: bf16[128,256], index: 2, kind: input, shape index: {}]
  %s3 = inlined_call_operand.vmem [shape: f32[1,128], index: 3, kind: input, shape index: {}]
  %s4 = inlined_call_operand.vmem [shape: f32[1,256], index: 4, kind: input, shape index: {}]
  %s5 = inlined_call_operand.hbm [shape: f32[8,256], index: 5, kind: output, shape index: {}]
  %s6 = sld [smem:[#allocation0]]
  $region42: #{tpu_custom_call.1} parent=0
    _
  %s8 = ssub.s32 1, %s6
  %s9 = scalar_select 0, %s8, %s6
  $region1: #{tpu_custom_call.1} parent=0
    #allocation2 [shape = 'u8[4096]{0}', space=vmem, size = 0x1000, scoped, tag = 'input window, operand 0, single buffered']
    #allocation3 [shape = 's32[1]{0}', space=sflag, size = 0x4, scoped, tag = 'scoped memory for tpu_custom_call.1']
    #allocation4 [shape = 's32[1]{0}', space=sflag, size = 0x4, scoped, tag = 'scoped memory for tpu_custom_call.1']
    #allocation5 [shape = 'u8[4096]{0}', space=vmem, size = 0x1000, scoped, tag = 'input window, operand 1, single buffered']
    #allocation6 [shape = 's32[1]{0}', space=sflag, size = 0x4, scoped, tag = 'scoped memory for tpu_custom_call.1']
    #allocation7 [shape = 'u8[65536]{0}', space=vmem, size = 0x10000, scoped, tag = 'input window, operand 2, single buffered']
    #allocation8 [shape = 'u8[8192]{0}', space=vmem, size = 0x2000, scoped, tag = 'output window, operand 0, single buffered']
    %10 = vsyncpa [#allocation3], 0
    %11 = vsyncpa [#allocation6], 0
    %12 = vsyncpa [#allocation4], 0
    // Predicated region
    $region2: #{tpu_custom_call.1} parent=1 // pred_check
      _
    $region3: #{tpu_custom_call.1} parent=1 // pred_check_branch
      %14 = sbr.rel (0) target = $region5
    $region4: #{tpu_custom_call.1} parent=1 // pred_region
      %16 = vsyncadd [#allocation3], 0
      %s18 = sshll.u32 %s0, 4
      %s19 = int_to_ptr.hbm [resolvable:$true] %s18
      %s20 = sshll.u32 [#allocation2], 4
      %s21 = int_to_ptr.vmem [resolvable:$true] %s20
      %23 = dma.hbm_to_vmem [thread:$0]  %s19, 128, %s21, [#allocation3]
    $region5: #{tpu_custom_call.1} parent=1 // pred_fallthru
      _
    // Predicated region
    $region6: #{tpu_custom_call.1} parent=1 // pred_check
      _
    $region7: #{tpu_custom_call.1} parent=1 // pred_check_branch
      %25 = sbr.rel (0) target = $region9
    $region8: #{tpu_custom_call.1} parent=1 // pred_region
      %27 = vsyncadd [#allocation6], 0
      %s29 = sshll.u32 %s1, 4
      %s30 = int_to_ptr.hbm [resolvable:$true] %s29
      %s31 = sshll.u32 [#allocation5], 4
      %s32 = int_to_ptr.vmem [resolvable:$true] %s31
      %34 = dma.hbm_to_vmem [thread:$0]  %s30, 128, %s32, [#allocation6]
    $region9: #{tpu_custom_call.1} parent=1 // pred_fallthru
      _
    // Predicated region
    $region10: #{tpu_custom_call.1} parent=1 // pred_check
      _
    $region11: #{tpu_custom_call.1} parent=1 // pred_check_branch
      %36 = sbr.rel (0) target = $region13
    $region12: #{tpu_custom_call.1} parent=1 // pred_region
      %38 = vsyncadd [#allocation6], 0
      %s39 = sshll.u32 %s2, 4
      %s40 = int_to_ptr.hbm [resolvable:$true] %s39
      %s41 = sshll.u32 [#allocation7], 4
      %s42 = int_to_ptr.vmem [resolvable:$true] %s41
      %47 = dma.hbm_to_vmem [thread:$0]  %s40, 2048, %s42, [#allocation6], 128, 128, 8
    $region13: #{tpu_custom_call.1} parent=1 // pred_fallthru
      _
    // Predicated region
    $region14: #{tpu_custom_call.1} parent=1 // pred_check
      _
    $region15: #{tpu_custom_call.1} parent=1 // pred_check_branch
      %49 = sbr.rel (0) target = $region17
    $region16: #{tpu_custom_call.1} parent=1 // pred_region
      _
    $region17: #{tpu_custom_call.1} parent=1 // pred_fallthru
      _
    // Predicated region
    $region18: #{tpu_custom_call.1} parent=1 // pred_check
      _
    $region19: #{tpu_custom_call.1} parent=1 // pred_check_branch
      %51 = sbr.rel (0) target = $region21
    $region20: #{tpu_custom_call.1} parent=1 // pred_region
      _
    $region21: #{tpu_custom_call.1} parent=1 // pred_fallthru
      _
    // Predicated region
    $region22: #{tpu_custom_call.1} parent=1 // pred_check
      _
    $region23: #{tpu_custom_call.1} parent=1 // pred_check_branch
      %53 = sbr.rel (0) target = $region25
    $region24: #{tpu_custom_call.1} parent=1 // pred_region
      %55 = dma.done [#allocation3], 128
    $region25: #{tpu_custom_call.1} parent=1 // pred_fallthru
      _
    // Predicated region
    $region26: #{tpu_custom_call.1} parent=1 // pred_check
      _
    $region27: #{tpu_custom_call.1} parent=1 // pred_check_branch
      %57 = sbr.rel (0) target = $region29
    $region28: #{tpu_custom_call.1} parent=1 // pred_region
      %59 = dma.done [#allocation6], 128
    $region29: #{tpu_custom_call.1} parent=1 // pred_fallthru
      _
    // Predicated region
    $region30: #{tpu_custom_call.1} parent=1 // pred_check
      _
    $region31: #{tpu_custom_call.1} parent=1 // pred_check_branch
      %61 = sbr.rel (0) target = $region33
    $region32: #{tpu_custom_call.1} parent=1 // pred_region
      %63 = dma.done [#allocation6], 2048
    $region33: #{tpu_custom_call.1} parent=1 // pred_fallthru
      _
    %v64 = vld [vmem:[#allocation2] sm:$0xff]
    %v65 = vld [vmem:[#allocation7] sm:$0xff]
    %v66 = vld [vmem:[#allocation7 + $0x8] sm:$0xff]
    %v67 = vld [vmem:[#allocation7 + $0x10] sm:$0xff]
    %v68 = vld [vmem:[#allocation7 + $0x18] sm:$0xff]
    %v69 = vld [vmem:[#allocation7 + $0x20] sm:$0xff]
    %v70 = vld [vmem:[#allocation7 + $0x28] sm:$0xff]
    %v71 = vld [vmem:[#allocation7 + $0x30] sm:$0xff]
    %v72 = vld [vmem:[#allocation7 + $0x38] sm:$0xff]
    %v73 = vld [vmem:[#allocation7 + $0x40] sm:$0xff]
    %v74 = vld [vmem:[#allocation7 + $0x48] sm:$0xff]
    %v75 = vld [vmem:[#allocation7 + $0x50] sm:$0xff]
    %v76 = vld [vmem:[#allocation7 + $0x58] sm:$0xff]
    %v77 = vld [vmem:[#allocation7 + $0x60] sm:$0xff]
    %v78 = vld [vmem:[#allocation7 + $0x68] sm:$0xff]
    %v79 = vld [vmem:[#allocation7 + $0x70] sm:$0xff]
    %v80 = vld [vmem:[#allocation7 + $0x78] sm:$0xff]
    %v81 = vld [vmem:[%s3] sm:$0x1]
    %v83 = vperm.slane %v81, 0
    %v86 = vunpack.c.l.b16 %v64
    %v87 = vunpack.c.h.b16 %v64
    %v88 = vpack.c.b16 %v86, %v86
    %v89 = vpack.c.b16 %v87, %v87
    %v108 = vunpack.c.l.b16 %v65
    %v109 = vunpack.c.h.b16 %v65
    %v110 = vunpack.c.l.b16 %v66
    %v111 = vunpack.c.h.b16 %v66
    %v112 = vunpack.c.l.b16 %v67
    %v113 = vunpack.c.h.b16 %v67
    %v114 = vunpack.c.l.b16 %v68
    %v115 = vunpack.c.h.b16 %v68
    %v116 = vunpack.c.l.b16 %v69
    %v117 = vunpack.c.h.b16 %v69
    %v118 = vunpack.c.l.b16 %v70
    %v119 = vunpack.c.h.b16 %v70
    %v120 = vunpack.c.l.b16 %v71
    %v121 = vunpack.c.h.b16 %v71
    %v122 = vunpack.c.l.b16 %v72
    %v123 = vunpack.c.h.b16 %v72
    %v124 = vunpack.c.l.b16 %v73
    %v125 = vunpack.c.h.b16 %v73
    %v126 = vunpack.c.l.b16 %v74
    %v127 = vunpack.c.h.b16 %v74
    %v128 = vunpack.c.l.b16 %v75
    %v129 = vunpack.c.h.b16 %v75
    %v130 = vunpack.c.l.b16 %v76
    %v131 = vunpack.c.h.b16 %v76
    %v132 = vunpack.c.l.b16 %v77
    %v133 = vunpack.c.h.b16 %v77
    %v134 = vunpack.c.l.b16 %v78
    %v135 = vunpack.c.h.b16 %v78
    %v136 = vunpack.c.l.b16 %v79
    %v137 = vunpack.c.h.b16 %v79
    %v138 = vunpack.c.l.b16 %v80
    %v139 = vunpack.c.h.b16 %v80
    %v140 = vpack.c.b16 %v110, %v108
    %v141 = vpack.c.b16 %v111, %v109
    %v142 = vpack.c.b16 %v114, %v112
    %v143 = vpack.c.b16 %v115, %v113
    %v144 = vpack.c.b16 %v118, %v116
    %v145 = vpack.c.b16 %v119, %v117
    %v146 = vpack.c.b16 %v122, %v120
    %v147 = vpack.c.b16 %v123, %v121
    %v148 = vpack.c.b16 %v126, %v124
    %v149 = vpack.c.b16 %v127, %v125
    %v150 = vpack.c.b16 %v130, %v128
    %v151 = vpack.c.b16 %v131, %v129
    %v152 = vpack.c.b16 %v134, %v132
    %v153 = vpack.c.b16 %v135, %v133
    %v154 = vpack.c.b16 %v138, %v136
    %v155 = vpack.c.b16 %v139, %v137
    %172 = vmatpush.bf16.xpose.msra.mxu0 %v154
    %173 = vmatpush.bf16.xpose.msra.mxu0 %v152
    %174 = vmatpush.bf16.xpose.msra.mxu0 %v150
    %175 = vmatpush.bf16.xpose.msra.mxu0 %v148
    %176 = vmatpush.bf16.xpose.msra.mxu0 %v146
    %177 = vmatpush.bf16.xpose.msra.mxu0 %v144
    %178 = vmatpush.bf16.xpose.msra.mxu0 %v142
    %179 = vmatpush.bf16.xpose.msra.mxu0 %v140
    %180 = vmatmul.bf16.gmra.mxu0 %v88
    %v181 = vpop.f32.mrf.mxu0
    %v182 = vadd.f32 %v83, %v181
    %v183 = vpop.f32.mrf.mxu0
    %184 = vdwg.mxu0
    %185 = vmatpush.bf16.xpose.msra.mxu0 %v155
    %186 = vmatpush.bf16.xpose.msra.mxu0 %v153
    %187 = vmatpush.bf16.xpose.msra.mxu0 %v151
    %188 = vmatpush.bf16.xpose.msra.mxu0 %v149
    %189 = vmatpush.bf16.xpose.msra.mxu0 %v147
    %190 = vmatpush.bf16.xpose.msra.mxu0 %v145
    %191 = vmatpush.bf16.xpose.msra.mxu0 %v143
    %192 = vmatpush.bf16.xpose.msra.mxu0 %v141
    %193 = vmatmul.bf16.gmra.mxu0 %v89
    %v194 = vpop.f32.mrf.mxu0
    %v195 = vadd.f32 %v182, %v194
    %v196 = vpop.f32.mrf.mxu0
    %197 = vdwg.mxu0
    %v198 = vxor.u32 %v195, 2147483648
    %v199 = vmul.f32 %v198, 1.442695
    %v200 = vpow.pop %v199
    %v201 = vadd.f32 %v200, 1.0
    %v202 = vrcp.pop %v201
    %v203 = vmul.f32 %v201, %v202
    %v204 = vsub.f32 1.0, %v203
    %v205 = vmul.f32 %v202, %v204
    %v206 = vadd.f32 %v202, %v205
    %vm207 = vweird.f32 %v201
    %vm208 = vweird.f32 %v202
    %vm209 = vmor %vm207, %vm208
    %v210 = vsel %vm209, %v202, %v206
    %v211 = vand.u32 2147483647, %v201
    %vm212 = vcmp.eq.f32.partialorder %v211, 8.507059e+37
    %v213 = vand.u32 %v201, 2147483648
    %v214 = vor.u32 1.1754944e-38, %v213
    %v215 = vsel %vm212, %v214, %v210
    %v216 = vmul.f32 1.0, %v215
    %v217 = vld [vmem:[#allocation5] sm:$0xff]
    %vm218 = vcmp.lt.f32.partialorder %v217, %v216
    %v219 = vsel %vm218, 1, 0
    %v220 = vcvt.s32.f32 %v219
    %v221 = vpack.c.bf16 %v220, %v220
    %v222 = vld [vmem:[%s4] sm:$0x3]
    %v224 = vperm.slane %v222, 0
    %v225 = vperm.slane %v222, 1
    %228 = vmatpush.bf16.msra.mxu0 %v154
    %229 = vmatpush.bf16.msra.mxu0 %v152
    %230 = vmatpush.bf16.msra.mxu0 %v150
    %231 = vmatpush.bf16.msra.mxu0 %v148
    %232 = vmatpush.bf16.msra.mxu0 %v146
    %233 = vmatpush.bf16.msra.mxu0 %v144
    %234 = vmatpush.bf16.msra.mxu0 %v142
    %235 = vmatpush.bf16.msra.mxu0 %v140
    %236 = vmatmul.bf16.gmra.mxu0 %v221
    %v237 = vpop.f32.mrf.mxu0
    %v238 = vadd.f32 %v224, %v237
    %v239 = vpop.f32.mrf.mxu0
    %240 = vdwg.mxu0
    %241 = vmatpush.bf16.msra.mxu0 %v155
    %242 = vmatpush.bf16.msra.mxu0 %v153
    %243 = vmatpush.bf16.msra.mxu0 %v151
    %244 = vmatpush.bf16.msra.mxu0 %v149
    %245 = vmatpush.bf16.msra.mxu0 %v147
    %246 = vmatpush.bf16.msra.mxu0 %v145
    %247 = vmatpush.bf16.msra.mxu0 %v143
    %248 = vmatpush.bf16.msra.mxu0 %v141
    %249 = vmatmul.bf16.gmra.mxu0 %v221
    %v250 = vpop.f32.mrf.mxu0
    %v251 = vadd.f32 %v225, %v250
    %v252 = vpop.f32.mrf.mxu0
    %253 = vdwg.mxu0
    %v254 = vxor.u32 %v238, 2147483648
    %v255 = vxor.u32 %v251, 2147483648
    %v256 = vmul.f32 %v254, 1.442695
    %v257 = vpow.pop %v256
    %v258 = vmul.f32 %v255, 1.442695
    %v259 = vpow.pop %v258
    %v260 = vadd.f32 %v257, 1.0
    %v261 = vadd.f32 %v259, 1.0
    %v262 = vrcp.pop %v260
    %v263 = vmul.f32 %v260, %v262
    %v264 = vsub.f32 1.0, %v263
    %v265 = vmul.f32 %v262, %v264
    %v266 = vadd.f32 %v262, %v265
    %vm267 = vweird.f32 %v260
    %vm268 = vweird.f32 %v262
    %vm269 = vmor %vm267, %vm268
    %v270 = vsel %vm269, %v262, %v266
    %v271 = vand.u32 2147483647, %v260
    %vm272 = vcmp.eq.f32.partialorder %v271, 8.507059e+37
    %v273 = vand.u32 %v260, 2147483648
    %v274 = vor.u32 1.1754944e-38, %v273
    %v275 = vsel %vm272, %v274, %v270
    %v276 = vmul.f32 1.0, %v275
    %v277 = vrcp.pop %v261
    %v278 = vmul.f32 %v261, %v277
    %v279 = vsub.f32 1.0, %v278
    %v280 = vmul.f32 %v277, %v279
    %v281 = vadd.f32 %v277, %v280
    %vm282 = vweird.f32 %v261
    %vm283 = vweird.f32 %v277
    %vm284 = vmor %vm282, %vm283
    %v285 = vsel %vm284, %v277, %v281
    %v286 = vand.u32 2147483647, %v261
    %vm287 = vcmp.eq.f32.partialorder %v286, 8.507059e+37
    %v288 = vand.u32 %v261, 2147483648
    %v289 = vor.u32 1.1754944e-38, %v288
    %v290 = vsel %vm287, %v289, %v285
    %v291 = vmul.f32 1.0, %v290
    %292 = vst [vmem:[#allocation8] sm:$0xff] %v276
    %293 = vst [vmem:[#allocation8 + $0x8] sm:$0xff] %v291
    // Predicated region
    $region34: #{tpu_custom_call.1} parent=1 // pred_check
      _
    $region35: #{tpu_custom_call.1} parent=1 // pred_check_branch
      %295 = sbr.rel (0) target = $region37
    $region36: #{tpu_custom_call.1} parent=1 // pred_region
      %297 = vsyncadd [#allocation4], 0
      %s299 = sshll.u32 [#allocation8], 4
      %s300 = int_to_ptr.vmem [resolvable:$true] %s299
      %s301 = sshll.u32 %s5, 4
      %s302 = int_to_ptr.hbm [resolvable:$true] %s301
      %304 = dma.vmem_to_hbm [thread:$0]  %s300, 256, %s302, [#allocation4]
    $region37: #{tpu_custom_call.1} parent=1 // pred_fallthru
      _
    // Predicated region
    $region38: #{tpu_custom_call.1} parent=1 // pred_check
      _
    $region39: #{tpu_custom_call.1} parent=1 // pred_check_branch
      %306 = sbr.rel (0) target = $region41
    $region40: #{tpu_custom_call.1} parent=1 // pred_region
      %308 = dma.done [#allocation4], 256
    $region41: #{tpu_custom_call.1} parent=1 // pred_fallthru
      _
    %309 = vsyncpa [#allocation3], 1
    %310 = vsyncpa [#allocation6], 1
    %311 = vsyncpa [#allocation4], 1

</llo_original>
